<compile_context>
chip_gen: v7x
topology: tpu7x:2x2x1
jax: 0.10.0
libtpu: 0.0.40
codegen_flags: <defaults>
</compile_context>

<pallas_src>
import functools

import jax
import jax.numpy as jnp
from jax.experimental import pallas as pl
from jax.experimental.pallas import tpu as pltpu

_LOG_2PI = 1.8378770664093453  # log(2*pi)


def _round_up(x, m):
    return ((x + m - 1) // m) * m


def _regressor_kernel(rep_ref, w_ref, b_ref, obs_ref,
                      out_ref, psum_ref, *, n_total, tile_n):
    # theta^T = w^T @ rep^T on the MXU: (D,2) x (tile_n,D) -> (2, tile_n),
    # native input dtype, f32 accumulation.
    theta_t = jax.lax.dot_general(
        w_ref[...], rep_ref[...],
        dimension_numbers=(((0,), (1,)), ((), ())),
        preferred_element_type=jnp.float32)                    # (2, tile_n)
    theta_t = theta_t + b_ref[...].astype(jnp.float32)         # (2, 1) bias broadcast

    loc = theta_t[0:1, :]                                      # (1, tile_n)
    log_scale = theta_t[1:2, :]                                # (1, tile_n)
    scale = jnp.exp(log_scale)                                 # single EUP exp

    # Lane-dense packed output: row 0 = loc, row 1 = scale (unmasked vst).
    out_ref[0:1, :] = loc.astype(out_ref.dtype)
    out_ref[1:2, :] = scale.astype(out_ref.dtype)

    # Gaussian NLL pieces, all (1, tile_n) f32. Approximate EUP reciprocal is
    # fine for a loss (see tolerance in __main__).
    obs = obs_ref[...].astype(jnp.float32)                     # (1, tile_n)
    inv_scale = pl.reciprocal(scale, approx=True)
    z = (obs - loc) * inv_scale
    log_prob = -0.5 * z * z - log_scale - 0.5 * _LOG_2PI       # (1, tile_n)

    # Mask tail lanes of the last block (clipped DMA leaves garbage there).
    # Mask strictly before the sum; jnp.where is a lane select, so NaN/Inf from
    # garbage lanes does not propagate.
    col = (pl.program_id(0) * tile_n
           + jax.lax.broadcasted_iota(jnp.int32, log_prob.shape, 1))
    log_prob = jnp.where(col < n_total, log_prob, 0.0)

    # Per-block partial sum of log_prob; reduced + negated + /N outside.
    psum_ref[...] = jnp.full((1, 1, 1), jnp.sum(log_prob), dtype=psum_ref.dtype)


def regressor_forward_and_loss(representation, w, b, observation, *, tile_n=2048):
    """Returns (loc_scale [N, 2] with columns [loc, scale], nll scalar)."""
    N, D = representation.shape
    obs_row = observation.reshape(1, N)
    b_col = b.reshape(2, 1)

    itemsize = jnp.dtype(representation.dtype).itemsize
    # Row tile: multiple of 128 (lanes), capped at padded N and at a VMEM
    # budget (~28 MiB double-buffered working set) that is safe on v7x's
    # 64 MiB physical VMEM and well under the 40 MiB scoped limit we request.
    per_row_bytes = 2 * (D * itemsize + 12)     # double-buffered rep + obs + (2,) out
    vmem_cap = max(128, ((28 * 1024 * 1024) // per_row_bytes) // 128 * 128)
    tile_n = max(128, min(_round_up(tile_n, 128), _round_up(N, 128), vmem_cap))
    num_blocks = (N + tile_n - 1) // tile_n

    out_shapes = (
        jax.ShapeDtypeStruct((2, N), jnp.float32),              # rows [loc, scale]
        jax.ShapeDtypeStruct((num_blocks, 1, 1), jnp.float32),  # partial log_prob sums
    )

    grid_spec = pl.GridSpec(
        grid=(num_blocks,),
        in_specs=[
            pl.BlockSpec((tile_n, D), lambda i: (i, 0)),  # representation (streamed)
            pl.BlockSpec((D, 2), lambda i: (0, 0)),       # weights (resident)
            pl.BlockSpec((2, 1), lambda i: (0, 0)),       # bias (resident)
            pl.BlockSpec((1, tile_n), lambda i: (0, i)),  # observation (streamed, lane-major)
        ],
        out_specs=[
            pl.BlockSpec((2, tile_n), lambda i: (0, i)),      # packed [loc; scale]
            pl.BlockSpec((1, 1, 1), lambda i: (i, 0, 0)),     # per-block partial sum
        ],
    )

    loc_scale_t, partials = pl.pallas_call(
        functools.partial(_regressor_kernel, n_total=N, tile_n=tile_n),
        out_shape=out_shapes,
        grid_spec=grid_spec,
        compiler_params=pltpu.CompilerParams(
            dimension_semantics=("parallel",),
            vmem_limit_bytes=40 * 1024 * 1024),
    )(representation, w, b_col, obs_row)

    nll = -(jnp.sum(partials) / N)
    loc_scale = loc_scale_t.T                       # (N, 2), cheap layout plumbing
    return loc_scale, nll


def _reference(representation, w, b, observation):
    theta = representation.astype(jnp.float32) @ w.astype(jnp.float32) + b.reshape(1, 2)
    loc = theta[:, 0:1]
    log_scale = theta[:, 1:2]
    scale = jnp.exp(log_scale)
    obs = observation.reshape(-1, 1)
    z = (obs - loc) / scale
    log_prob = -0.5 * z * z - log_scale - 0.5 * _LOG_2PI
    return loc, scale, -jnp.mean(log_prob)


if __name__ == "__main__":
    key = jax.random.PRNGKey(0)
    k_rep, k_w, k_obs = jax.random.split(key, 3)

    # Small shapes; N deliberately not a multiple of the tile so the run
    # exercises a multi-block grid plus tail-lane masking.
    N, D = 400, 32  # batch of graph representations, in_features = 32
    representation = jax.random.normal(k_rep, (N, D), dtype=jnp.float32)
    observation = jax.random.normal(k_obs, (N,), dtype=jnp.float32)

    # Deterministic parameter init (linear head: in_features -> 2).
    w = 0.1 * jax.random.normal(k_w, (D, 2), dtype=jnp.float32)
    b = jnp.zeros((2,), dtype=jnp.float32)

    # tile_n=256 (lane-aligned, multiple of 128) -> 2 grid blocks, last one partial.
    loc_scale, nll = regressor_forward_and_loss(
        representation, w, b, observation, tile_n=256)
    jax.block_until_ready((loc_scale, nll))

    loc = loc_scale[:, 0:1]
    scale = loc_scale[:, 1:2]

    loc_ref, scale_ref, nll_ref = _reference(representation, w, b, observation)
    assert jnp.allclose(loc, loc_ref, atol=1e-5, rtol=1e-5)
    assert jnp.allclose(scale, scale_ref, atol=1e-5, rtol=1e-5)
    # Looser tolerance on the loss: z uses the hardware approximate reciprocal.
    assert jnp.allclose(nll, nll_ref, atol=1e-2, rtol=1e-2)

    print("KERNEL_OK")
</pallas_src>

<mosaic_0001>
module attributes {stable_mosaic.version = 11 : i64} {
  func.func @_regressor_kernel(%arg0: i32, %arg1: memref<256x32xf32, #tpu.memory_space<vmem>>, %arg2: memref<32x2xf32, #tpu.memory_space<vmem>>, %arg3: memref<2x1xf32, #tpu.memory_space<vmem>>, %arg4: memref<1x256xf32, #tpu.memory_space<vmem>>, %arg5: memref<2x256xf32, #tpu.memory_space<vmem>>, %arg6: memref<1x1x1xf32, #tpu.memory_space<vmem>>) attributes {dimension_semantics = [#tpu.dimension_semantics<parallel>], iteration_bounds = array<i64: 2>, scalar_prefetch = 0 : i64, scratch_operands = 0 : i64, tpu.core_type = #tpu.core_type<tc>, window_params = [{transform_indices = @transform_0, window_bounds = array<i64: 256, 32>}, {pipeline_mode = #tpu.pipeline_mode<synchronous>, transform_indices = @transform_1, window_bounds = array<i64: 32, 2>}, {pipeline_mode = #tpu.pipeline_mode<synchronous>, transform_indices = @transform_2, window_bounds = array<i64: 2, 1>}, {transform_indices = @transform_3, window_bounds = array<i64: 1, 256>}, {transform_indices = @transform_4, window_bounds = array<i64: 2, 256>}, {transform_indices = @transform_5, window_bounds = array<i64: 1, 1, 1>}]} {
    %c0 = arith.constant 0 : index
    %c0_0 = arith.constant 0 : index
    %0 = vector.load %arg2[%c0, %c0_0] : memref<32x2xf32, #tpu.memory_space<vmem>>, vector<32x2xf32>
    %c0_1 = arith.constant 0 : index
    %c0_2 = arith.constant 0 : index
    %1 = vector.load %arg1[%c0_1, %c0_2] : memref<256x32xf32, #tpu.memory_space<vmem>>, vector<256x32xf32>
    %cst = arith.constant dense<0.000000e+00> : vector<2x256xf32>
    %2 = tpu.matmul %0, %1, %cst {dimension_numbers = #tpu.dot_dimension_numbers<[0], [1], [1], [0], [0, 1, 1, 0], [], []>} : vector<32x2xf32>, vector<256x32xf32>, vector<2x256xf32> -> vector<2x256xf32>
    %c0_3 = arith.constant 0 : index
    %c0_4 = arith.constant 0 : index
    %3 = vector.load %arg3[%c0_3, %c0_4] : memref<2x1xf32, #tpu.memory_space<vmem>>, vector<2x1xf32>
    %4 = vector.broadcast %3 : vector<2x1xf32> to vector<2x256xf32>
    %5 = arith.addf %2, %4 : vector<2x256xf32>
    %6 = vector.extract_strided_slice %5 {offsets = [0, 0], sizes = [1, 256], strides = [1, 1]} : vector<2x256xf32> to vector<1x256xf32>
    %7 = vector.extract_strided_slice %5 {offsets = [1, 0], sizes = [1, 256], strides = [1, 1]} : vector<2x256xf32> to vector<1x256xf32>
    %8 = math.exp %7 : vector<1x256xf32>
    %c0_5 = arith.constant 0 : index
    %c0_6 = arith.constant 0 : index
    %9 = vector.load %arg5[%c0_5, %c0_6] : memref<2x256xf32, #tpu.memory_space<vmem>>, vector<1x256xf32>
    tpu.vector_store %arg5[%c0_5, %c0_6], %6 {strides = array<i32>} : memref<2x256xf32, #tpu.memory_space<vmem>>, vector<1x256xf32>,
    %c1 = arith.constant 1 : index
    %c0_7 = arith.constant 0 : index
    %10 = vector.load %arg5[%c1, %c0_7] : memref<2x256xf32, #tpu.memory_space<vmem>>, vector<1x256xf32>
    tpu.vector_store %arg5[%c1, %c0_7], %8 {strides = array<i32>} : memref<2x256xf32, #tpu.memory_space<vmem>>, vector<1x256xf32>,
    %c0_8 = arith.constant 0 : index
    %c0_9 = arith.constant 0 : index
    %11 = vector.load %arg4[%c0_8, %c0_9] : memref<1x256xf32, #tpu.memory_space<vmem>>, vector<1x256xf32>
    %12 = tpu.reciprocal %8 {approx = true} : vector<1x256xf32> -> vector<1x256xf32>
    %13 = arith.subf %11, %6 : vector<1x256xf32>
    %14 = arith.mulf %13, %12 : vector<1x256xf32>
    %cst_10 = arith.constant -5.000000e-01 : f32
    %15 = vector.broadcast %cst_10 : f32 to vector<1x256xf32>
    %16 = arith.mulf %15, %14 : vector<1x256xf32>
    %17 = arith.mulf %16, %14 : vector<1x256xf32>
    %18 = arith.subf %17, %7 : vector<1x256xf32>
    %cst_11 = arith.constant 0.918938517 : f32
    %19 = vector.broadcast %cst_11 : f32 to vector<1x256xf32>
    %20 = arith.subf %18, %19 : vector<1x256xf32>
    %c256_i32 = arith.constant 256 : i32
    %21 = arith.muli %arg0, %c256_i32 : i32
    %22 = tpu.iota {dimensions = array<i32: 1>} : vector<1x256xi32>
    %23 = vector.broadcast %21 : i32 to vector<1x256xi32>
    %24 = arith.addi %23, %22 : vector<1x256xi32>
    %c400_i32 = arith.constant 400 : i32
    %25 = vector.broadcast %c400_i32 : i32 to vector<1x256xi32>
    %26 = arith.cmpi slt, %24, %25 : vector<1x256xi32>
    %cst_12 = arith.constant 0.000000e+00 : f32
    %27 = vector.broadcast %cst_12 : f32 to vector<1x256xf32>
    %28 = arith.select %26, %20, %27 : vector<1x256xi1>, vector<1x256xf32>
    %29 = vector.shape_cast %28 : vector<1x256xf32> to vector<1x1x256xf32>
    %cst_13 = arith.constant dense<0.000000e+00> : vector<1xf32>
    %30 = vector.multi_reduction <add>, %29, %cst_13 [1, 2] : vector<1x1x256xf32> to vector<1xf32>
    %31 = vector.shape_cast %30 : vector<1xf32> to vector<1x1x1xf32>
    %32 = vector.extract %31[0, 0, 0] : f32 from vector<1x1x1xf32>
    %33 = vector.broadcast %32 : f32 to vector<1x1x1xf32>
    %c0_14 = arith.constant 0 : index
    %c0_15 = arith.constant 0 : index
    %c0_16 = arith.constant 0 : index
    %34 = vector.load %arg6[%c0_14, %c0_15, %c0_16] : memref<1x1x1xf32, #tpu.memory_space<vmem>>, vector<1x1x1xf32>
    tpu.vector_store %arg6[%c0_14, %c0_15, %c0_16], %33 {strides = array<i32>} : memref<1x1x1xf32, #tpu.memory_space<vmem>>, vector<1x1x1xf32>,
    return
  }
  func.func @transform_0(%arg0: i32) -> (i32, i32) {
    %c0_i32 = arith.constant 0 : i32
    %c0_i32_0 = arith.constant 0 : i32
    return %arg0, %c0_i32 : i32, i32
  }
  func.func @transform_1(%arg0: i32) -> (i32, i32) {
    %c0_i32 = arith.constant 0 : i32
    %c0_i32_0 = arith.constant 0 : i32
    %c0_i32_1 = arith.constant 0 : i32
    return %c0_i32, %c0_i32_0 : i32, i32
  }
  func.func @transform_2(%arg0: i32) -> (i32, i32) {
    %c0_i32 = arith.constant 0 : i32
    %c0_i32_0 = arith.constant 0 : i32
    %c0_i32_1 = arith.constant 0 : i32
    return %c0_i32, %c0_i32_0 : i32, i32
  }
  func.func @transform_3(%arg0: i32) -> (i32, i32) {
    %c0_i32 = arith.constant 0 : i32
    %c0_i32_0 = arith.constant 0 : i32
    return %c0_i32, %arg0 : i32, i32
  }
  func.func @transform_4(%arg0: i32) -> (i32, i32) {
    %c0_i32 = arith.constant 0 : i32
    %c0_i32_0 = arith.constant 0 : i32
    return %c0_i32, %arg0 : i32, i32
  }
  func.func @transform_5(%arg0: i32) -> (i32, i32, i32) {
    %c0_i32 = arith.constant 0 : i32
    %c0_i32_0 = arith.constant 0 : i32
    %c0_i32_1 = arith.constant 0 : i32
    return %arg0, %c0_i32, %c0_i32_0 : i32, i32, i32
  }
}

</mosaic_0001>

<llo_original>
// kernel: tpu_custom_call.1
$region0: #{tpu_custom_call.1}
  #allocation0 [shape = 'u32[]', space=smem, size = 0x4, offset = 0x4, fixed_abs, tag = 'smem constant byte address 0x4 - core index']
  #allocation1 [shape = 'u32[144,128]{1,0:T(1,128)}', space=vmem, size = 0x12000, scoped, tag = 'internal scratch']
  %s0 = inlined_call_operand.vmem [shape: f32[400,32], index: 0, kind: input, shape index: {}]
  %s1 = inlined_call_operand.vmem [shape: f32[32,2], index: 1, kind: input, shape index: {}]
  %s2 = inlined_call_operand.vmem [shape: f32[2,1], index: 2, kind: input, shape index: {}]
  %s3 = inlined_call_operand.vmem [shape: f32[1,400], index: 3, kind: input, shape index: {}]
  %s4 = inlined_call_operand.hbm [shape: f32[2,400], index: 4, kind: output, shape index: {0}]
  %s5 = inlined_call_operand.vmem [shape: f32[2,1,1], index: 5, kind: output, shape index: {1}]
  %6 = xla_tuple %s4, %s5
  %s7 = sld [smem:[#allocation0]]
  $region57: #{tpu_custom_call.1} parent=0
    _
  %s9 = ssub.s32 1, %s7
  %s10 = scalar_select 0, %s9, %s7
  $region1: #{tpu_custom_call.1} parent=0
    #allocation2 [shape = 'u8[4096]{0}', space=vmem, size = 0x1000, scoped, tag = 'output window, operand 0']
    #allocation3 [shape = 's32[2]{0}', space=sflag, size = 0x8, scoped, tag = 'scoped memory for tpu_custom_call.1']
    %11 = vsyncpa [#allocation3], 0
    %s12 = scalar_lea.sflag [#allocation3], 1
    %13 = vsyncpa %s12, 0
    loop: start=0, step=1, limit=4
    $region2: #{tpu_custom_call.1} parent=1 // loop_pre_header
      _
    $region3: #{tpu_custom_call.1} parent=1 // loop_header
      %s15 = sphi 0, %s19
      %p16 = scmp.ge.s32.totalorder %s15, 4
      %s25 = sphi 0, %s27
      %s28 = sphi 0, %s25
      %s29 = sphi 0, %s28
      %s45 = sphi 0, %s29
      %s49 = sphi 0, %s49
      %s51 = sphi 0, %s49
      %s52 = sphi 0, %s51
      %s66 = sphi 0, %s52
      %s70 = sphi 0, %s70
      %s72 = sphi 0, %s70
      %s73 = sphi 0, %s72
      %s87 = sphi 0, %s73
      %s93 = sphi 0, %s95
      %s96 = sphi 0, %s93
      %s97 = sphi 0, %s96
      %s113 = sphi 0, %s97
      %s119 = sphi 0, %s121
      %s122 = sphi 0, %s119
      %s123 = sphi 0, %s122
      %s139 = sphi 0, %s123
      %s145 = sphi 0, %s147
      %s148 = sphi 0, %s145
      %s149 = sphi 0, %s148
      %s165 = sphi 0, %s149
    $region4: #{tpu_custom_call.1} parent=1 // loop_header_branch
      %18 = sbr.rel (%p16) target = $region8
    $region5: #{tpu_custom_call.1} parent=1 // loop_body
      %s20 = ssub.s32 %s15, 1
      %s21 = ssub.s32 %s15, 2
      %s22 = sadd.s32 %s15, 1
      %s23 = ssub.s32 %s15, %s22
      %p24 = scmp.eq.s32.totalorder %s23, 0
      %s26 = sadd.s32 %s25, 1
      %s27 = scalar_select %p24, %s25, %s26
      %p30 = pneg %p24
      %p31 = scmp.eq.s32.totalorder %s15, 1
      %p32 = por %p30, %p31
      %p33 = scmp.ne.s32.totalorder %s25, %s28
      %p34 = scmp.eq.s32.totalorder %s15, 0
      %p35 = por %p33, %p34
      %p36 = scmp.ne.s32.totalorder %s25, %s28
      %p37 = scmp.eq.s32.totalorder %s20, 1
      %p38 = por %p36, %p37
      %p39 = scmp.ne.s32.totalorder %s28, %s29
      %p40 = scmp.eq.s32.totalorder %s20, 0
      %p41 = por %p39, %p40
      %p42 = scmp.ne.s32.totalorder %s28, %s29
      %p43 = scmp.eq.s32.totalorder %s21, 1
      %p44 = por %p42, %p43
      %p46 = scmp.ne.s32.totalorder %s29, %s45
      %p47 = scmp.eq.s32.totalorder %s21, 0
      %p48 = por %p46, %p47
      %s50 = sadd.s32 %s49, 1
      %p53 = scmp.eq.s32.totalorder %s15, 1
      %p54 = scmp.ne.s32.totalorder %s49, %s51
      %p55 = scmp.eq.s32.totalorder %s15, 0
      %p56 = por %p54, %p55
      %p57 = scmp.ne.s32.totalorder %s49, %s51
      %p58 = scmp.eq.s32.totalorder %s20, 1
      %p59 = por %p57, %p58
      %p60 = scmp.ne.s32.totalorder %s51, %s52
      %p61 = scmp.eq.s32.totalorder %s20, 0
      %p62 = por %p60, %p61
      %p63 = scmp.ne.s32.totalorder %s51, %s52
      %p64 = scmp.eq.s32.totalorder %s21, 1
      %p65 = por %p63, %p64
      %p67 = scmp.ne.s32.totalorder %s52, %s66
      %p68 = scmp.eq.s32.totalorder %s21, 0
      %p69 = por %p67, %p68
      %s71 = sadd.s32 %s70, 1
      %p74 = scmp.eq.s32.totalorder %s15, 1
      %p75 = scmp.ne.s32.totalorder %s70, %s72
      %p76 = scmp.eq.s32.totalorder %s15, 0
      %p77 = por %p75, %p76
      %p78 = scmp.ne.s32.totalorder %s70, %s72
      %p79 = scmp.eq.s32.totalorder %s20, 1
      %p80 = por %p78, %p79
      %p81 = scmp.ne.s32.totalorder %s72, %s73
      %p82 = scmp.eq.s32.totalorder %s20, 0
      %p83 = por %p81, %p82
      %p84 = scmp.ne.s32.totalorder %s72, %s73
      %p85 = scmp.eq.s32.totalorder %s21, 1
      %p86 = por %p84, %p85
      %p88 = scmp.ne.s32.totalorder %s73, %s87
      %p89 = scmp.eq.s32.totalorder %s21, 0
      %p90 = por %p88, %p89
      %s91 = ssub.s32 %s15, %s22
      %p92 = scmp.eq.s32.totalorder %s91, 0
      %s94 = sadd.s32 %s93, 1
      %s95 = scalar_select %p92, %s93, %s94
      %p98 = pneg %p92
      %p99 = scmp.eq.s32.totalorder %s15, 1
      %p100 = por %p98, %p99
      %p101 = scmp.ne.s32.totalorder %s93, %s96
      %p102 = scmp.eq.s32.totalorder %s15, 0
      %p103 = por %p101, %p102
      %p104 = scmp.ne.s32.totalorder %s93, %s96
      %p105 = scmp.eq.s32.totalorder %s20, 1
      %p106 = por %p104, %p105
      %p107 = scmp.ne.s32.totalorder %s96, %s97
      %p108 = scmp.eq.s32.totalorder %s20, 0
      %p109 = por %p107, %p108
      %p110 = scmp.ne.s32.totalorder %s96, %s97
      %p111 = scmp.eq.s32.totalorder %s21, 1
      %p112 = por %p110, %p111
      %p114 = scmp.ne.s32.totalorder %s97, %s113
      %p115 = scmp.eq.s32.totalorder %s21, 0
      %p116 = por %p114, %p115
      %s117 = ssub.s32 %s15, %s22
      %p118 = scmp.eq.s32.totalorder %s117, 0
      %s120 = sadd.s32 %s119, 1
      %s121 = scalar_select %p118, %s119, %s120
      %p124 = pneg %p118
      %p125 = scmp.eq.s32.totalorder %s15, 1
      %p126 = por %p124, %p125
      %p127 = scmp.ne.s32.totalorder %s119, %s122
      %p128 = scmp.eq.s32.totalorder %s15, 0
      %p129 = por %p127, %p128
      %p130 = scmp.ne.s32.totalorder %s119, %s122
      %p131 = scmp.eq.s32.totalorder %s20, 1
      %p132 = por %p130, %p131
      %p133 = scmp.ne.s32.totalorder %s122, %s123
      %p134 = scmp.eq.s32.totalorder %s20, 0
      %p135 = por %p133, %p134
      %p136 = scmp.ne.s32.totalorder %s122, %s123
      %p137 = scmp.eq.s32.totalorder %s21, 1
      %p138 = por %p136, %p137
      %p140 = scmp.ne.s32.totalorder %s123, %s139
      %p141 = scmp.eq.s32.totalorder %s21, 0
      %p142 = por %p140, %p141
      %s143 = ssub.s32 %s15, %s22
      %p144 = scmp.eq.s32.totalorder %s143, 0
      %s146 = sadd.s32 %s145, 1
      %s147 = scalar_select %p144, %s145, %s146
      %p150 = pneg %p144
      %p151 = scmp.eq.s32.totalorder %s15, 1
      %p152 = por %p150, %p151
      %p153 = scmp.ne.s32.totalorder %s145, %s148
      %p154 = scmp.eq.s32.totalorder %s15, 0
      %p155 = por %p153, %p154
      %p156 = scmp.ne.s32.totalorder %s145, %s148
      %p157 = scmp.eq.s32.totalorder %s20, 1
      %p158 = por %p156, %p157
      %p159 = scmp.ne.s32.totalorder %s148, %s149
      %p160 = scmp.eq.s32.totalorder %s20, 0
      %p161 = por %p159, %p160
      %p162 = scmp.ne.s32.totalorder %s148, %s149
      %p163 = scmp.eq.s32.totalorder %s21, 1
      %p164 = por %p162, %p163
      %p166 = scmp.ne.s32.totalorder %s149, %s165
      %p167 = scmp.eq.s32.totalorder %s21, 0
      %p168 = por %p166, %p167
      %p169 = scmp.le.s32.totalorder 1, %s15
      %p170 = scmp.lt.s32.totalorder %s15, 3
      %p171 = pnand %p169, %p170
      %p172 = pneg %p171
      // Predicated region
      $region9: #{tpu_custom_call.1} parent=5 // pred_check
        _
      $region10: #{tpu_custom_call.1} parent=5 // pred_check_branch
        %174 = sbr.rel (%p171) target = $region12
      $region11: #{tpu_custom_call.1} parent=5 // pred_region
        %s175 = ssub.s32 %s15, 1
        // Predicated region
        $region13: #{tpu_custom_call.1} parent=11 // pred_check
          %p176 = pneg %p62
        $region14: #{tpu_custom_call.1} parent=11 // pred_check_branch
          %178 = sbr.rel (%p176) target = $region16
        $region15: #{tpu_custom_call.1} parent=11 // pred_region
          _
        $region16: #{tpu_custom_call.1} parent=11 // pred_fallthru
          _
        // Predicated region
        $region17: #{tpu_custom_call.1} parent=11 // pred_check
          %p179 = pneg %p83
        $region18: #{tpu_custom_call.1} parent=11 // pred_check_branch
          %181 = sbr.rel (%p179) target = $region20
        $region19: #{tpu_custom_call.1} parent=11 // pred_region
          _
        $region20: #{tpu_custom_call.1} parent=11 // pred_fallthru
          _
      $region12: #{tpu_custom_call.1} parent=5 // pred_fallthru
        _
      %p182 = scmp.lt.s32.totalorder %s15, 2
      // Predicated region
      $region21: #{tpu_custom_call.1} parent=5 // pred_check
        %p183 = pneg %p182
      $region22: #{tpu_custom_call.1} parent=5 // pred_check_branch
        %185 = sbr.rel (%p183) target = $region24
      $region23: #{tpu_custom_call.1} parent=5 // pred_region
        // Predicated region
        $region25: #{tpu_custom_call.1} parent=23 // pred_check
          %p186 = pneg %p35
        $region26: #{tpu_custom_call.1} parent=23 // pred_check_branch
          %188 = sbr.rel (%p186) target = $region28
        $region27: #{tpu_custom_call.1} parent=23 // pred_region
          %s189 = smul.u32 32, %s15
          %s190 = ssub.s32 50, %s189
          %p191 = scmp.lt.s32.totalorder %s190, 32
          %s192 = scalar_select %p191, %s190, 32
          %s193 = smul.u32 128, %s192
          %p194 = scmp.lt.s32.totalorder %s189, 49
          %s195 = scalar_select %p194, %s189, 49
          %s196 = smul.addr %s195, 8
          %s197 = scalar_lea.vmem %s0, %s196
          %s198 = smul.u32 32, %s15
          %s199 = ssub.s32 50, %s198
          %p200 = scmp.lt.s32.totalorder %s199, 32
          %s201 = scalar_select %p200, %s199, 32
          %s202 = smul.u32 128, %s201
        $region28: #{tpu_custom_call.1} parent=23 // pred_fallthru
          _
        // Predicated region
        $region29: #{tpu_custom_call.1} parent=23 // pred_check
          %p203 = pneg %p103
        $region30: #{tpu_custom_call.1} parent=23 // pred_check_branch
          %205 = sbr.rel (%p203) target = $region32
        $region31: #{tpu_custom_call.1} parent=23 // pred_region
          %s206 = smul.u32 2, %s15
          %p207 = scmp.lt.s32.totalorder %s206, 3
          %s208 = scalar_select %p207, %s206, 3
          %s209 = scalar_lea.vmem %s3, %s208
          %s210 = smul.u32 2, %s15
        $region32: #{tpu_custom_call.1} parent=23 // pred_fallthru
          _
      $region24: #{tpu_custom_call.1} parent=5 // pred_fallthru
        _
      %p211 = scmp.le.s32.totalorder 1, %s15
      %p212 = scmp.lt.s32.totalorder %s15, 3
      %p213 = pnand %p211, %p212
      %p214 = pneg %p213
      // Predicated region
      $region33: #{tpu_custom_call.1} parent=5 // pred_check
        _
      $region34: #{tpu_custom_call.1} parent=5 // pred_check_branch
        %216 = sbr.rel (%p213) target = $region36
      $region35: #{tpu_custom_call.1} parent=5 // pred_region
        %s217 = ssub.s32 %s15, 1
        %s218 = smul.u32 32, %s20
        %s219 = ssub.s32 50, %s218
        %p220 = scmp.lt.s32.totalorder %s219, 32
        %s221 = scalar_select %p220, %s219, 32
        %s222 = smul.u32 128, %s221
        %p223 = scmp.lt.s32.totalorder %s218, 49
        %s224 = scalar_select %p223, %s218, 49
        %s225 = smul.addr %s224, 8
        %s226 = scalar_lea.vmem %s0, %s225
        %p227 = pneg %p41
        %p228 = pneg %p38
        %p229 = pneg %p62
        %p230 = pneg %p59
        %p231 = pneg %p83
        %p232 = pneg %p80
        %s233 = smul.u32 2, %s20
        %p234 = scmp.lt.s32.totalorder %s233, 3
        %s235 = scalar_select %p234, %s233, 3
        %s236 = scalar_lea.vmem %s3, %s235
        %p237 = pneg %p109
        %p238 = pneg %p106
        %p239 = pneg %p135
        %p240 = pneg %p132
        %s241 = sand.u32 %s122, 1
        %s242 = scalar_lea.sflag [#allocation3], %s241
        %s243 = sand.u32 %s122, 1
        %s244 = smul.addr %s243, 4
        %s245 = scalar_lea.vmem [#allocation2], %s244
        %p246 = pneg %p161
        %p247 = pneg %p158
        %p248 = scmp.lt.s32.totalorder %s20, 1
        %s249 = scalar_select %p248, %s20, 1
        %s250 = scalar_lea.vmem %s5, %s249
        %s251 = smul.u32 32, %s20
        %s252 = ssub.s32 50, %s251
        %p253 = scmp.lt.s32.totalorder %s252, 32
        %s254 = scalar_select %p253, %s252, 32
        %s255 = smul.u32 128, %s254
        %p256 = scmp.lt.s32.totalorder %s251, 49
        %s257 = scalar_select %p256, %s251, 49
        %s258 = smul.addr %s257, 8
        %s259 = scalar_lea.vmem %s0, %s258
        %s260 = smul.u32 32, %s20
        %s261 = ssub.s32 50, %s260
        %p262 = scmp.lt.s32.totalorder %s261, 32
        %s263 = scalar_select %p262, %s261, 32
        %s264 = smul.u32 128, %s263
        %s265 = smul.u32 2, %s20
        %p266 = scmp.lt.s32.totalorder %s265, 3
        %s267 = scalar_select %p266, %s265, 3
        %s268 = scalar_lea.vmem %s3, %s267
        %s269 = smul.u32 2, %s20
        %s270 = smul.u32 2, %s20
        %p271 = scmp.lt.s32.totalorder %s20, 1
        %s272 = scalar_select %p271, %s20, 1
        %s273 = scalar_lea.vmem %s5, %s272
        %v274 = vld [vmem:[%s1] sm:$0xff]
        %v275 = vld [vmem:[%s1 + $0x8] sm:$0xff]
        %v276 = vld [vmem:[%s1 + $0x10] sm:$0xff]
        %v277 = vld [vmem:[%s1 + $0x18] sm:$0xff]
        %v278 = vld [vmem:[%s259] sm:$0xff]
        %v279 = vld [vmem:[%s259 + $0x8] sm:$0xff]
        %v280 = vld [vmem:[%s259 + $0x10] sm:$0xff]
        %v281 = vld [vmem:[%s259 + $0x18] sm:$0xff]
        %v282 = vld [vmem:[%s259 + $0x20] sm:$0xff]
        %v283 = vld [vmem:[%s259 + $0x28] sm:$0xff]
        %v284 = vld [vmem:[%s259 + $0x30] sm:$0xff]
        %v285 = vld [vmem:[%s259 + $0x38] sm:$0xff]
        %v286 = vld [vmem:[%s259 + $0x40] sm:$0xff]
        %v287 = vld [vmem:[%s259 + $0x48] sm:$0xff]
        %v288 = vld [vmem:[%s259 + $0x50] sm:$0xff]
        %v289 = vld [vmem:[%s259 + $0x58] sm:$0xff]
        %v290 = vld [vmem:[%s259 + $0x60] sm:$0xff]
        %v291 = vld [vmem:[%s259 + $0x68] sm:$0xff]
        %v292 = vld [vmem:[%s259 + $0x70] sm:$0xff]
        %v293 = vld [vmem:[%s259 + $0x78] sm:$0xff]
        %v294 = vld [vmem:[%s259 + $0x80] sm:$0xff]
        %v295 = vld [vmem:[%s259 + $0x88] sm:$0xff]
        %v296 = vld [vmem:[%s259 + $0x90] sm:$0xff]
        %v297 = vld [vmem:[%s259 + $0x98] sm:$0xff]
        %v298 = vld [vmem:[%s259 + $0xa0] sm:$0xff]
        %v299 = vld [vmem:[%s259 + $0xa8] sm:$0xff]
        %v300 = vld [vmem:[%s259 + $0xb0] sm:$0xff]
        %v301 = vld [vmem:[%s259 + $0xb8] sm:$0xff]
        %v302 = vld [vmem:[%s259 + $0xc0] sm:$0xff]
        %v303 = vld [vmem:[%s259 + $0xc8] sm:$0xff]
        %v304 = vld [vmem:[%s259 + $0xd0] sm:$0xff]
        %v305 = vld [vmem:[%s259 + $0xd8] sm:$0xff]
        %v306 = vld [vmem:[%s259 + $0xe0] sm:$0xff]
        %v307 = vld [vmem:[%s259 + $0xe8] sm:$0xff]
        %v308 = vld [vmem:[%s259 + $0xf0] sm:$0xff]
        %v309 = vld [vmem:[%s259 + $0xf8] sm:$0xff]
        %v310 = vld [vmem:[%s2] sm:$0x3]
        %312 = vset.pattern.permute.xlu0 0
        %313 = vperm.xlu0 %312, %v310
        %v314 = vpop.permute.xlu0 %313
        %316 = vxpose.xlu0.b32.start [1/16] %v274, 128
        %317 = vxpose.xlu0.b32.cont [2/16] %v275, 128
        %318 = vxpose.xlu0.b32.cont [3/16] %v276, 128
        %319 = vxpose.xlu0.b32.cont [4/16] %v277, 128
        %320 = vxpose.xlu0.b32.cont [5/16] 0.0, 128
        %321 = vxpose.xlu0.b32.cont [6/16] 0.0, 128
        %322 = vxpose.xlu0.b32.cont [7/16] 0.0, 128
        %323 = vxpose.xlu0.b32.cont [8/16] 0.0, 128
        %324 = vxpose.xlu0.b32.cont [9/16] 0.0, 128
        %325 = vxpose.xlu0.b32.cont [10/16] 0.0, 128
        %326 = vxpose.xlu0.b32.cont [11/16] 0.0, 128
        %327 = vxpose.xlu0.b32.cont [12/16] 0.0, 128
        %328 = vxpose.xlu0.b32.cont [13/16] 0.0, 128
        %329 = vxpose.xlu0.b32.cont [14/16] 0.0, 128
        %330 = vxpose.xlu0.b32.cont [15/16] 0.0, 128
        %331 = vxpose.xlu0.b32.end [16/16] 0.0, 128
        %v332 = vpop.trf.xlu0
        %v333 = vpop.trf.xlu0
        %v334 = vpop.trf.xlu0
        %v335 = vpop.trf.xlu0
        %v336 = vpop.trf.xlu0
        %v337 = vpop.trf.xlu0
        %v338 = vpop.trf.xlu0
        %v339 = vpop.trf.xlu0
        %v340 = vpop.trf.xlu0
        %v341 = vpop.trf.xlu0
        %v342 = vpop.trf.xlu0
        %v343 = vpop.trf.xlu0
        %v344 = vpop.trf.xlu0
        %v345 = vpop.trf.xlu0
        %v346 = vpop.trf.xlu0
        %v347 = vpop.trf.xlu0
        %vm348 = vcmask 261120
        %v350 = vsel %vm348, %v332, 0
        %v353 = vsel %vm348, %v278, 0
        %v356 = vsel %vm348, %v279, 0
        %v359 = vsel %vm348, %v280, 0
        %v362 = vsel %vm348, %v281, 0
        %v365 = vsel %vm348, %v282, 0
        %v368 = vsel %vm348, %v283, 0
        %v371 = vsel %vm348, %v284, 0
        %v374 = vsel %vm348, %v285, 0
        %v377 = vsel %vm348, %v286, 0
        %v380 = vsel %vm348, %v287, 0
        %v383 = vsel %vm348, %v288, 0
        %v386 = vsel %vm348, %v289, 0
        %v389 = vsel %vm348, %v290, 0
        %v392 = vsel %vm348, %v291, 0
        %v395 = vsel %vm348, %v292, 0
        %v398 = vsel %vm348, %v293, 0
        %v401 = vsel %vm348, %v294, 0
        %v404 = vsel %vm348, %v295, 0
        %v407 = vsel %vm348, %v296, 0
        %v410 = vsel %vm348, %v297, 0
        %v413 = vsel %vm348, %v298, 0
        %v416 = vsel %vm348, %v299, 0
        %v419 = vsel %vm348, %v300, 0
        %v422 = vsel %vm348, %v301, 0
        %v425 = vsel %vm348, %v302, 0
        %v428 = vsel %vm348, %v303, 0
        %v431 = vsel %vm348, %v304, 0
        %v434 = vsel %vm348, %v305, 0
        %v437 = vsel %vm348, %v306, 0
        %v440 = vsel %vm348, %v307, 0
        %v443 = vsel %vm348, %v308, 0
        %v446 = vsel %vm348, %v309, 0
        %448 = vmatprep.subr.mxu0 0.0
        %449 = vmatpush1.xpose.msra.mxu0 %v353
        %450 = vmatprep.subr.mxu0 0.0
        %451 = vmatpush1.xpose.msra.mxu0 %v356
        %452 = vmatprep.subr.mxu0 0.0
        %453 = vmatpush1.xpose.msra.mxu0 %v359
        %454 = vmatprep.subr.mxu0 0.0
        %455 = vmatpush1.xpose.msra.mxu0 %v362
        %456 = vmatprep.subr.mxu0 0.0
        %457 = vmatpush1.xpose.msra.mxu0 %v365
        %458 = vmatprep.subr.mxu0 0.0
        %459 = vmatpush1.xpose.msra.mxu0 %v368
        %460 = vmatprep.subr.mxu0 0.0
        %461 = vmatpush1.xpose.msra.mxu0 %v371
        %462 = vmatprep.subr.mxu0 0.0
        %463 = vmatpush1.xpose.msra.mxu0 %v374
        %464 = vmatprep.subr.mxu0 0.0
        %465 = vmatpush1.xpose.msra.mxu0 %v377
        %466 = vmatprep.subr.mxu0 0.0
        %467 = vmatpush1.xpose.msra.mxu0 %v380
        %468 = vmatprep.subr.mxu0 0.0
        %469 = vmatpush1.xpose.msra.mxu0 %v383
        %470 = vmatprep.subr.mxu0 0.0
        %471 = vmatpush1.xpose.msra.mxu0 %v386
        %472 = vmatprep.subr.mxu0 0.0
        %473 = vmatpush1.xpose.msra.mxu0 %v389
        %474 = vmatprep.subr.mxu0 0.0
        %475 = vmatpush1.xpose.msra.mxu0 %v392
        %476 = vmatprep.subr.mxu0 0.0
        %477 = vmatpush1.xpose.msra.mxu0 %v395
        %478 = vmatprep.subr.mxu0 0.0
        %479 = vmatpush1.xpose.msra.mxu0 %v398
        %480 = vmatprep.subr.mxu0 0.0
        %481 = vmatpush1.xpose.msra.mxu0 %v401
        %482 = vmatprep.subr.mxu0 0.0
        %483 = vmatpush1.xpose.msra.mxu0 %v404
        %484 = vmatprep.subr.mxu0 0.0
        %485 = vmatpush1.xpose.msra.mxu0 %v407
        %486 = vmatprep.subr.mxu0 0.0
        %487 = vmatpush1.xpose.msra.mxu0 %v410
        %488 = vmatprep.subr.mxu0 0.0
        %489 = vmatpush1.xpose.msra.mxu0 %v413
        %490 = vmatprep.subr.mxu0 0.0
        %491 = vmatpush1.xpose.msra.mxu0 %v416
        %492 = vmatprep.subr.mxu0 0.0
        %493 = vmatpush1.xpose.msra.mxu0 %v419
        %494 = vmatprep.subr.mxu0 0.0
        %495 = vmatpush1.xpose.msra.mxu0 %v422
        %496 = vmatprep.subr.mxu0 0.0
        %497 = vmatpush1.xpose.msra.mxu0 %v425
        %498 = vmatprep.subr.mxu0 0.0
        %499 = vmatpush1.xpose.msra.mxu0 %v428
        %500 = vmatprep.subr.mxu0 0.0
        %501 = vmatpush1.xpose.msra.mxu0 %v431
        %502 = vmatprep.subr.mxu0 0.0
        %503 = vmatpush1.xpose.msra.mxu0 %v434
        %504 = vmatprep.subr.mxu0 0.0
        %505 = vmatpush1.xpose.msra.mxu0 %v437
        %506 = vmatprep.subr.mxu0 0.0
        %507 = vmatpush1.xpose.msra.mxu0 %v440
        %508 = vmatprep.subr.mxu0 0.0
        %509 = vmatpush1.xpose.msra.mxu0 %v443
        %510 = vmatprep.subr.mxu0 0.0
        %511 = vmatpush1.xpose.msra.mxu0 %v446
        %512 = vmatprep.mubr.f32.mxu0 0.0
        %513 = vmatmul.mubr.f32.gmra.mrb[0].mxu0 %v350
        %v514 = vpop.f32.mrb[0].mxu0
        %v515 = vadd.f32 %v314, %v514
        %v516 = vpop.f32.mrb[0].mxu0
        %v517 = vadd.f32 %v314, %v516
        %518 = vdwg.mxu0
        %v519 = vmul.f32 %v515, 1.442695
        %v520 = vpow.pop %v519
        %v521 = vmul.f32 %v517, 1.442695
        %v522 = vpow.pop %v521
        %v525 = vcombine.low %v515, %v517
        %v527 = vunpack.c.l.s4 1966171168
        %v528 = vunpack.c.0.s8 %v527
        %v529 = vlaneseq
        %v530 = vshrl.u32 %v529, 7
        %v531 = vsub.s32 %v528, %v530
        %v532 = vrot.slane %v525, %v531
        %v534 = vunpack.c.l.s4 1966171168
        %v535 = vunpack.c.0.s8 %v534
        %v536 = vlaneseq
        %v537 = vshrl.u32 %v536, 7
        %v538 = vsub.s32 %v535, %v537
        %v539 = vrot.slane %v532, %v538
        %v541 = vlaneseq
        %vm542 = vcmp.ge.s32.totalorder %v541, 0
        %vm543 = vcmp.lt.s32.totalorder %v541, 256
        %vm544 = vmand %vm542, %vm543
        %545 = vst.msk [vmem:[%s245] ss:$2 sm:$0x3] %vm544, %v539
        %v548 = vcombine.low %v520, %v522
        %v550 = vunpack.c.l.s4 1966171168
        %v551 = vunpack.c.0.s8 %v550
        %v552 = vlaneseq
        %v553 = vshrl.u32 %v552, 7
        %v554 = vsub.s32 %v551, %v553
        %v555 = vrot.slane %v548, %v554
        %v556 = vcombine.high %v555, %v555
        %v558 = vunpack.c.l.s4 1966171168
        %v559 = vunpack.c.0.s8 %v558
        %v560 = vlaneseq
        %v561 = vshrl.u32 %v560, 7
        %v562 = vsub.s32 %v559, %v561
        %v563 = vrot.slane %v556, %v562
        %s565 = scalar_lea.vmem %s245, 1 [#allocation2]
        %566 = vst.msk [vmem:[%s565] ss:$2 sm:$0x3] %vm544, %v563
        %v567 = vld [vmem:[%s268] sm:$0x3]
        %v568 = vrcp.pop %v520
        %v569 = vrcp.pop %v522
        %v570 = vsub.f32 %v567, %v539
        %v573 = vcombine.low %v568, %v569
        %v575 = vunpack.c.l.s4 1966171168
        %v576 = vunpack.c.0.s8 %v575
        %v577 = vlaneseq
        %v578 = vshrl.u32 %v577, 7
        %v579 = vsub.s32 %v576, %v578
        %v580 = vrot.slane %v573, %v579
        %v581 = vcombine.high %v580, %v580
        %v583 = vunpack.c.l.s4 1966171168
        %v584 = vunpack.c.0.s8 %v583
        %v585 = vlaneseq
        %v586 = vshrl.u32 %v585, 7
        %v587 = vsub.s32 %v584, %v586
        %v588 = vrot.slane %v581, %v587
        %v590 = vmul.f32 %v570, %v588
        %v591 = vmul.f32 %v590, -0.5
        %v592 = vmul.f32 %v591, %v590
        %v593 = vcombine.high %v532, %v532
        %v595 = vunpack.c.l.s4 1966171168
        %v596 = vunpack.c.0.s8 %v595
        %v597 = vlaneseq
        %v598 = vshrl.u32 %v597, 7
        %v599 = vsub.s32 %v596, %v598
        %v600 = vrot.slane %v593, %v599
        %v602 = vsub.f32 %v592, %v600
        %v603 = vsub.f32 %v602, 0.9189385
        %s604 = smul.u32 %s20, 256
        %v605 = vlaneseq
        %v606 = vand.u32 %v605, 127
        %v607 = vadd.s32 %v606, 128
        %v608 = vstv %s604
        %v609 = vadd.s32 %v608, %v606
        %v610 = vadd.s32 %v608, %v607
        %vm611 = vcmp.lt.s32.totalorder %v609, 400
        %vm612 = vcmp.lt.s32.totalorder %v610, 400
        %v614 = vlaneseq
        %v615 = vshrl.u32 %v614, 7
        %v616 = vsub.s32 0, %v615
        %v617 = vrot.slane %v603, %v616
        %v618 = vlaneseq
        %v619 = vshrl.u32 %v618, 7
        %v620 = vsub.s32 1, %v619
        %v621 = vrot.slane %v603, %v620
        %v624 = vsel %vm611, %v617, 0.0
        %v625 = vsel %vm612, %v621, 0.0
        %vm626 = vcmask 1040384
        %v627 = vsel %vm626, %v624, 0.0
        %v628 = vsel %vm626, %v625, 0.0
        %v629 = vadd.f32 %v627, %v628
        %630 = vadd.xlane.f32.xlu0 %v629
        %v631 = vpop.xlane.xlu0 %630
        %v632 = vrot.slane %v631, 4
        %v633 = vadd.f32 %v631, %v632
        %v634 = vrot.slane %v633, 2
        %v635 = vadd.f32 %v633, %v634
        %v636 = vrot.slane %v635, 1
        %v637 = vadd.f32 %v635, %v636
        %s638 = vtos %v637
        %v639 = vstv %s638
        %vm640 = vcmask 0
        %641 = vst.msk [vmem:[%s273] sm:$0x1] %vm640, %v639
        %s642 = sand.u32 %s122, 1
        %s643 = scalar_lea.sflag [#allocation3], %s642
        %s644 = sand.u32 %s122, 1
        %s645 = smul.addr %s644, 4
        %s646 = scalar_lea.vmem [#allocation2], %s645
        %p647 = scmp.lt.s32.totalorder %s20, 1
        %s648 = scalar_select %p647, %s20, 1
        %s649 = scalar_lea.vmem %s5, %s648
        // Predicated region
        $region37: #{tpu_custom_call.1} parent=35 // pred_check
          %p650 = pneg %p132
        $region38: #{tpu_custom_call.1} parent=35 // pred_check_branch
          %652 = sbr.rel (%p650) target = $region40
        $region39: #{tpu_custom_call.1} parent=35 // pred_region
          %s653 = smul.u32 2, %s20
          %s655 = ssub.s32 64, 64
          %656 = vsyncadd %s643, %s655
          %s657 = smul.addr %s653, 32
          %s658 = scalar_lea.hbm %s4, %s657
          %s660 = sshll.u32 %s646, 4
          %s661 = int_to_ptr.vmem [resolvable:$true] %s660
          %663 = dma.vmem_to_hbm [thread:$0]  %s661, 64, %s658, %s643
        $region40: #{tpu_custom_call.1} parent=35 // pred_fallthru
          _
        // Predicated region
        $region41: #{tpu_custom_call.1} parent=35 // pred_check
          %p664 = pneg %p158
        $region42: #{tpu_custom_call.1} parent=35 // pred_check_branch
          %666 = sbr.rel (%p664) target = $region44
        $region43: #{tpu_custom_call.1} parent=35 // pred_region
          _
        $region44: #{tpu_custom_call.1} parent=35 // pred_fallthru
          _
      $region36: #{tpu_custom_call.1} parent=5 // pred_fallthru
        _
      %p667 = scmp.le.s32.totalorder 2, %s15
      // Predicated region
      $region45: #{tpu_custom_call.1} parent=5 // pred_check
        %p668 = pneg %p667
      $region46: #{tpu_custom_call.1} parent=5 // pred_check_branch
        %670 = sbr.rel (%p668) target = $region48
      $region47: #{tpu_custom_call.1} parent=5 // pred_region
        %s671 = ssub.s32 %s15, 2
        // Predicated region
        $region49: #{tpu_custom_call.1} parent=47 // pred_check
          %p672 = pneg %p138
        $region50: #{tpu_custom_call.1} parent=47 // pred_check_branch
          %674 = sbr.rel (%p672) target = $region52
        $region51: #{tpu_custom_call.1} parent=47 // pred_region
          %s675 = sand.u32 %s123, 1
          %s676 = scalar_lea.sflag [#allocation3], %s675
          %s677 = sand.u32 %s123, 1
          %s678 = smul.addr %s677, 4
          %s679 = scalar_lea.vmem [#allocation2], %s678
          %680 = dma.done %s676, 64
        $region52: #{tpu_custom_call.1} parent=47 // pred_fallthru
          _
        // Predicated region
        $region53: #{tpu_custom_call.1} parent=47 // pred_check
          %p681 = pneg %p164
        $region54: #{tpu_custom_call.1} parent=47 // pred_check_branch
          %683 = sbr.rel (%p681) target = $region56
        $region55: #{tpu_custom_call.1} parent=47 // pred_region
          %p684 = scmp.lt.s32.totalorder %s21, 1
          %s685 = scalar_select %p684, %s21, 1
          %s686 = scalar_lea.vmem %s5, %s685
        $region56: #{tpu_custom_call.1} parent=47 // pred_fallthru
          _
      $region48: #{tpu_custom_call.1} parent=5 // pred_fallthru
        _
    $region6: #{tpu_custom_call.1} parent=1 // loop_footer
      %s19 = sadd.s32 1, %s15
    $region7: #{tpu_custom_call.1} parent=1 // loop_footer_branch
      %14 = sbr.rel target = $region3
    $region8: #{tpu_custom_call.1} parent=1 // loop_exit
      _
    %687 = vsyncpa [#allocation3], 1
    %s688 = scalar_lea.sflag [#allocation3], 1
    %689 = vsyncpa %s688, 1

</llo_original>
